<compile_context>
chip_gen: v7x
topology: tpu7x:2x2x1
jax: 0.10.0
libtpu: 0.0.40
codegen_flags: <defaults>
</compile_context>

<pallas_src>
import functools

import jax
import jax.numpy as jnp
from jax.experimental import pallas as pl
from jax.experimental.pallas import tpu as pltpu


_LANES = 128          # lane-dense output width
_BATCH_TILE = 512     # rows per batch tile for the tiled (large-batch) path


def _encoder_kernel(x_ref, w1_ref, b1_ref, w2c_ref, b2c_ref, out_ref):
    # x_ref:   (B, D_in)   VMEM
    # w1_ref:  (D_in, H)   VMEM
    # b1_ref:  (1, H)      VMEM
    # w2c_ref: (1, H)      VMEM   -- selected latent column of W2, as a row
    # b2c_ref: (1, 1)      VMEM   -- selected latent bias
    # out_ref: (B, 128)    VMEM   -- lane-dense output tile
    x = x_ref[...]
    h = jnp.dot(x, w1_ref[...], preferred_element_type=jnp.float32) + b1_ref[...]
    h = jnp.maximum(h, 0.0)                                   # ReLU on the VPU
    # Selected latent dim: VPU multiply + XLU lane reduce (no N=1 MXU matmul).
    z = jnp.sum(h * w2c_ref[...], axis=-1, keepdims=True) + b2c_ref[...]
    # Lane-dense, unmasked store: broadcast the scalar across 128 lanes.
    out_ref[...] = jnp.broadcast_to(z, out_ref.shape).astype(out_ref.dtype)


def ae_encoder_single_dim(x, w1, b1, w2, b2, *, dim):
    """Pallas implementation of AEEncoderSingleDim.forward.

    x may have any shape; it is flattened to (-1, in_features) exactly like
    the PyTorch `x.view(-1, in_features)` branch.  Returns (B, 1) float32.
    """
    in_features, hidden = w1.shape
    latent = w2.shape[1]
    assert 0 <= dim < latent, f"dim={dim} out of range for latent size {latent}"

    if x.ndim != 2 or x.shape[1] != in_features:
        x = x.reshape(-1, in_features)            # glue reshape (plain JAX)
    b = x.shape[0]

    # Wrapper-side layout plumbing (free): select the requested latent column.
    b1_row = b1.reshape(1, hidden)
    w2_col_row = w2[:, dim].reshape(1, hidden)    # (1, H) row for VPU broadcast
    b2_col = b2[dim].reshape(1, 1)                # (1, 1) scalar bias

    if b < _BATCH_TILE:
        # ---- Small-batch path: no grid, whole-array VMEM blocks. -----------
        out_wide = pl.pallas_call(
            _encoder_kernel,
            out_shape=jax.ShapeDtypeStruct((b, _LANES), jnp.float32),
            in_specs=[pl.BlockSpec(memory_space=pltpu.MemorySpace.VMEM)] * 5,
            out_specs=pl.BlockSpec(memory_space=pltpu.MemorySpace.VMEM),
        )(x, w1, b1_row, w2_col_row, b2_col)
        return out_wide[:, :1]

    # ---- Large-batch path: tile the batch, keep weights VMEM-resident. -----
    tm = _BATCH_TILE
    pad = (-b) % tm
    if pad:
        x = jnp.pad(x, ((0, pad), (0, 0)))        # extra rows sliced off below
    bp = b + pad
    out_wide = pl.pallas_call(
        _encoder_kernel,
        out_shape=jax.ShapeDtypeStruct((bp, _LANES), jnp.float32),
        grid_spec=pltpu.PrefetchScalarGridSpec(
            num_scalar_prefetch=0,
            grid=(bp // tm,),
            in_specs=[
                pl.BlockSpec((tm, in_features), lambda i: (i, 0)),
                pl.BlockSpec((in_features, hidden), lambda i: (0, 0)),
                pl.BlockSpec((1, hidden), lambda i: (0, 0)),
                pl.BlockSpec((1, hidden), lambda i: (0, 0)),
                pl.BlockSpec((1, 1), lambda i: (0, 0)),
            ],
            out_specs=pl.BlockSpec((tm, _LANES), lambda i: (i, 0)),
        ),
        compiler_params=pltpu.CompilerParams(
            dimension_semantics=("parallel",)),   # both TCs on v7x; no-op on v5e/v6e
    )(x, w1, b1_row, w2_col_row, b2_col)
    return out_wide[:b, :1]


def _reference(x, w1, b1, w2, b2, dim):
    in_features = w1.shape[0]
    if x.ndim != 2 or x.shape[1] != in_features:
        x = x.reshape(-1, in_features)
    h = jnp.maximum(x @ w1 + b1, 0.0)
    z = h @ w2 + b2
    return z[:, dim][:, None]


if __name__ == "__main__":
    key = jax.random.PRNGKey(0)
    k_x, k_w1, k_b1, k_w2, k_b2 = jax.random.split(key, 5)

    # NCHW-ish input (2, 4, 4, 4) flattened to (2, 64) = (B, in_features).
    B, C, H, W = 2, 4, 4, 4
    in_features = C * H * W        # 64
    hidden = 32
    latent = 8
    dim = 3

    x = jax.random.normal(k_x, (B, C, H, W), dtype=jnp.float32)

    # Deterministic synthetic encoder parameters (stored as (in, out)).
    w1 = jax.random.normal(k_w1, (in_features, hidden), dtype=jnp.float32) * 0.1
    b1 = jax.random.normal(k_b1, (hidden,), dtype=jnp.float32) * 0.1
    w2 = jax.random.normal(k_w2, (hidden, latent), dtype=jnp.float32) * 0.1
    b2 = jax.random.normal(k_b2, (latent,), dtype=jnp.float32) * 0.1

    out = ae_encoder_single_dim(x, w1, b1, w2, b2, dim=dim)
    out = jax.block_until_ready(out)

    ref = _reference(x, w1, b1, w2, b2, dim)
    assert out.shape == (B, 1), out.shape
    assert jnp.allclose(out, ref, atol=1e-5, rtol=1e-5), (out, ref)

    print("KERNEL_OK")
</pallas_src>

<mosaic_0001>
module attributes {stable_mosaic.version = 11 : i64} {
  func.func @_encoder_kernel(%arg0: memref<2x64xf32, #tpu.memory_space<vmem>>, %arg1: memref<64x32xf32, #tpu.memory_space<vmem>>, %arg2: memref<1x32xf32, #tpu.memory_space<vmem>>, %arg3: memref<1x32xf32, #tpu.memory_space<vmem>>, %arg4: memref<1x1xf32, #tpu.memory_space<vmem>>, %arg5: memref<2x128xf32, #tpu.memory_space<vmem>>) attributes {dimension_semantics = [], scalar_prefetch = 0 : i64, scratch_operands = 0 : i64, tpu.core_type = #tpu.core_type<tc>} {
    %c0 = arith.constant 0 : index
    %c0_0 = arith.constant 0 : index
    %0 = vector.load %arg0[%c0, %c0_0] : memref<2x64xf32, #tpu.memory_space<vmem>>, vector<2x64xf32>
    %c0_1 = arith.constant 0 : index
    %c0_2 = arith.constant 0 : index
    %1 = vector.load %arg1[%c0_1, %c0_2] : memref<64x32xf32, #tpu.memory_space<vmem>>, vector<64x32xf32>
    %cst = arith.constant dense<0.000000e+00> : vector<2x32xf32>
    %2 = tpu.matmul %0, %1, %cst {dimension_numbers = #tpu.dot_dimension_numbers<[1], [0], [0], [1], [0, 0, 1, 1], [], []>} : vector<2x64xf32>, vector<64x32xf32>, vector<2x32xf32> -> vector<2x32xf32>
    %c0_3 = arith.constant 0 : index
    %c0_4 = arith.constant 0 : index
    %3 = vector.load %arg2[%c0_3, %c0_4] : memref<1x32xf32, #tpu.memory_space<vmem>>, vector<1x32xf32>
    %4 = vector.broadcast %3 : vector<1x32xf32> to vector<2x32xf32>
    %5 = arith.addf %2, %4 : vector<2x32xf32>
    %cst_5 = arith.constant 0.000000e+00 : f32
    %6 = vector.broadcast %cst_5 : f32 to vector<2x32xf32>
    %7 = arith.maximumf %5, %6 : vector<2x32xf32>
    %c0_6 = arith.constant 0 : index
    %c0_7 = arith.constant 0 : index
    %8 = vector.load %arg3[%c0_6, %c0_7] : memref<1x32xf32, #tpu.memory_space<vmem>>, vector<1x32xf32>
    %9 = vector.broadcast %8 : vector<1x32xf32> to vector<2x32xf32>
    %10 = arith.mulf %7, %9 : vector<2x32xf32>
    %cst_8 = arith.constant dense<0.000000e+00> : vector<2xf32>
    %11 = vector.multi_reduction <add>, %10, %cst_8 [1] : vector<2x32xf32> to vector<2xf32>
    %12 = vector.shape_cast %11 : vector<2xf32> to vector<2x1xf32>
    %c0_9 = arith.constant 0 : index
    %c0_10 = arith.constant 0 : index
    %13 = vector.load %arg4[%c0_9, %c0_10] : memref<1x1xf32, #tpu.memory_space<vmem>>, vector<1x1xf32>
    %14 = vector.broadcast %13 : vector<1x1xf32> to vector<2x1xf32>
    %15 = arith.addf %12, %14 : vector<2x1xf32>
    %16 = vector.shape_cast %15 : vector<2x1xf32> to vector<2x1xf32>
    %17 = vector.broadcast %16 : vector<2x1xf32> to vector<2x128xf32>
    %c0_11 = arith.constant 0 : index
    %c0_12 = arith.constant 0 : index
    %18 = vector.load %arg5[%c0_11, %c0_12] : memref<2x128xf32, #tpu.memory_space<vmem>>, vector<2x128xf32>
    tpu.vector_store %arg5[%c0_11, %c0_12], %17 {strides = array<i32>} : memref<2x128xf32, #tpu.memory_space<vmem>>, vector<2x128xf32>,
    return
  }
}

</mosaic_0001>

<llo_original>
// kernel: tpu_custom_call.1
$region0: #{tpu_custom_call.1}
  #allocation0 [shape = 'u32[]', space=smem, size = 0x4, offset = 0x4, fixed_abs, tag = 'smem constant byte address 0x4 - core index']
  #allocation1 [shape = 'u32[144,128]{1,0:T(1,128)}', space=vmem, size = 0x12000, scoped, tag = 'internal scratch']
  #allocation2 [shape = 'f32[1,1]{1,0:T(1,128)S(1)}', space=vmem, size = 0x200, scoped, tag = 'scoped memory for tpu_custom_call.1']
  %s0 = inlined_call_operand.vmem [shape: f32[2,64], index: 0, kind: input, shape index: {}]
  %s1 = inlined_call_operand.vmem [shape: f32[64,32], index: 1, kind: input, shape index: {}]
  %s2 = inlined_call_operand.vmem [shape: f32[1,32], index: 2, kind: input, shape index: {}]
  %s3 = inlined_call_operand.vmem [shape: f32[1,32], index: 3, kind: input, shape index: {}]
  %s4 = inlined_call_operand.<no memory space> [shape: f32[1,1], index: 4, kind: input, shape index: {}]
  %s5 = inlined_call_operand.hbm [shape: f32[2,128], index: 5, kind: output, shape index: {}]
  %s6 = sld [smem:[#allocation0]]
  $region30: #{tpu_custom_call.1} parent=0
    _
  %s8 = ssub.s32 1, %s6
  %s9 = scalar_select 0, %s8, %s6
  %v10 = vstv %s4
  %11 = vst [vmem:[#allocation2] sm:$0x1] %v10
  $region1: #{tpu_custom_call.1} parent=0
    #allocation3 [shape = 'u8[1024]{0}', space=vmem, size = 0x400, scoped, tag = 'output window, operand 0, single buffered']
    #allocation4 [shape = 's32[1]{0}', space=sflag, size = 0x4, scoped, tag = 'scoped memory for tpu_custom_call.1']
    %12 = vsyncpa [#allocation4], 0
    // Predicated region
    $region2: #{tpu_custom_call.1} parent=1 // pred_check
      _
    $region3: #{tpu_custom_call.1} parent=1 // pred_check_branch
      %14 = sbr.rel (0) target = $region5
    $region4: #{tpu_custom_call.1} parent=1 // pred_region
      _
    $region5: #{tpu_custom_call.1} parent=1 // pred_fallthru
      _
    // Predicated region
    $region6: #{tpu_custom_call.1} parent=1 // pred_check
      _
    $region7: #{tpu_custom_call.1} parent=1 // pred_check_branch
      %16 = sbr.rel (0) target = $region9
    $region8: #{tpu_custom_call.1} parent=1 // pred_region
      _
    $region9: #{tpu_custom_call.1} parent=1 // pred_fallthru
      _
    // Predicated region
    $region10: #{tpu_custom_call.1} parent=1 // pred_check
      _
    $region11: #{tpu_custom_call.1} parent=1 // pred_check_branch
      %18 = sbr.rel (0) target = $region13
    $region12: #{tpu_custom_call.1} parent=1 // pred_region
      _
    $region13: #{tpu_custom_call.1} parent=1 // pred_fallthru
      _
    // Predicated region
    $region14: #{tpu_custom_call.1} parent=1 // pred_check
      _
    $region15: #{tpu_custom_call.1} parent=1 // pred_check_branch
      %20 = sbr.rel (0) target = $region17
    $region16: #{tpu_custom_call.1} parent=1 // pred_region
      _
    $region17: #{tpu_custom_call.1} parent=1 // pred_fallthru
      _
    // Predicated region
    $region18: #{tpu_custom_call.1} parent=1 // pred_check
      _
    $region19: #{tpu_custom_call.1} parent=1 // pred_check_branch
      %22 = sbr.rel (0) target = $region21
    $region20: #{tpu_custom_call.1} parent=1 // pred_region
      _
    $region21: #{tpu_custom_call.1} parent=1 // pred_fallthru
      _
    %v23 = vld [vmem:[%s0] sm:$0x3]
    %v24 = vld [vmem:[%s1] sm:$0xff]
    %v25 = vld [vmem:[%s1 + $0x8] sm:$0xff]
    %v26 = vld [vmem:[%s1 + $0x10] sm:$0xff]
    %v27 = vld [vmem:[%s1 + $0x18] sm:$0xff]
    %v28 = vld [vmem:[%s1 + $0x20] sm:$0xff]
    %v29 = vld [vmem:[%s1 + $0x28] sm:$0xff]
    %v30 = vld [vmem:[%s1 + $0x30] sm:$0xff]
    %v31 = vld [vmem:[%s1 + $0x38] sm:$0xff]
    %v32 = vld [vmem:[%s2] sm:$0x1]
    %v34 = vlaneseq
    %v35 = vshrl.u32 %v34, 7
    %v36 = vsub.s32 0, %v35
    %v37 = vrot.slane %v32, %v36
    %vm39 = vcmask 523264
    %v41 = vsel %vm39, %v23, 0
    %43 = vmatprep.subr.mxu0 0.0
    %44 = vmatpush1.msra.mxu0 %v24
    %45 = vmatprep.subr.mxu0 0.0
    %46 = vmatpush1.msra.mxu0 %v25
    %47 = vmatprep.subr.mxu0 0.0
    %48 = vmatpush1.msra.mxu0 %v26
    %49 = vmatprep.subr.mxu0 0.0
    %50 = vmatpush1.msra.mxu0 %v27
    %51 = vmatprep.subr.mxu0 0.0
    %52 = vmatpush1.msra.mxu0 %v28
    %53 = vmatprep.subr.mxu0 0.0
    %54 = vmatpush1.msra.mxu0 %v29
    %55 = vmatprep.subr.mxu0 0.0
    %56 = vmatpush1.msra.mxu0 %v30
    %57 = vmatprep.subr.mxu0 0.0
    %58 = vmatpush1.msra.mxu0 %v31
    %59 = vmatprep.subr.mxu0 0.0
    %60 = vmatpush1.msra.mxu0 0.0
    %61 = vmatprep.subr.mxu0 0.0
    %62 = vmatpush1.msra.mxu0 0.0
    %63 = vmatprep.subr.mxu0 0.0
    %64 = vmatpush1.msra.mxu0 0.0
    %65 = vmatprep.subr.mxu0 0.0
    %66 = vmatpush1.msra.mxu0 0.0
    %67 = vmatprep.subr.mxu0 0.0
    %68 = vmatpush1.msra.mxu0 0.0
    %69 = vmatprep.subr.mxu0 0.0
    %70 = vmatpush1.msra.mxu0 0.0
    %71 = vmatprep.subr.mxu0 0.0
    %72 = vmatpush1.msra.mxu0 0.0
    %73 = vmatprep.subr.mxu0 0.0
    %74 = vmatpush1.msra.mxu0 0.0
    %75 = vmatprep.subr.mxu0 0.0
    %76 = vmatpush1.msra.mxu0 0.0
    %77 = vmatprep.subr.mxu0 0.0
    %78 = vmatpush1.msra.mxu0 0.0
    %79 = vmatprep.subr.mxu0 0.0
    %80 = vmatpush1.msra.mxu0 0.0
    %81 = vmatprep.subr.mxu0 0.0
    %82 = vmatpush1.msra.mxu0 0.0
    %83 = vmatprep.subr.mxu0 0.0
    %84 = vmatpush1.msra.mxu0 0.0
    %85 = vmatprep.subr.mxu0 0.0
    %86 = vmatpush1.msra.mxu0 0.0
    %87 = vmatprep.subr.mxu0 0.0
    %88 = vmatpush1.msra.mxu0 0.0
    %89 = vmatprep.subr.mxu0 0.0
    %90 = vmatpush1.msra.mxu0 0.0
    %91 = vmatprep.subr.mxu0 0.0
    %92 = vmatpush1.msra.mxu0 0.0
    %93 = vmatprep.subr.mxu0 0.0
    %94 = vmatpush1.msra.mxu0 0.0
    %95 = vmatprep.subr.mxu0 0.0
    %96 = vmatpush1.msra.mxu0 0.0
    %97 = vmatprep.subr.mxu0 0.0
    %98 = vmatpush1.msra.mxu0 0.0
    %99 = vmatprep.subr.mxu0 0.0
    %100 = vmatpush1.msra.mxu0 0.0
    %101 = vmatprep.subr.mxu0 0.0
    %102 = vmatpush1.msra.mxu0 0.0
    %103 = vmatprep.subr.mxu0 0.0
    %104 = vmatpush1.msra.mxu0 0.0
    %105 = vmatprep.subr.mxu0 0.0
    %106 = vmatpush1.msra.mxu0 0.0
    %107 = vmatprep.mubr.f32.mxu0 0.0
    %108 = vmatmul.mubr.f32.gmra.mrb[0].mxu0 %v41
    %v109 = vpop.f32.mrb[0].mxu0
    %v110 = vadd.f32 %v37, %v109
    %v111 = vpop.f32.mrb[0].mxu0
    %112 = vdwg.mxu0
    %v113 = vmax.f32 %v110, 0.0
    %v114 = vld [vmem:[%s3] sm:$0x1]
    %v116 = vlaneseq
    %v117 = vshrl.u32 %v116, 7
    %v118 = vsub.s32 0, %v117
    %v119 = vrot.slane %v114, %v118
    %v121 = vmul.f32 %v113, %v119
    %vm122 = vcmask 254976
    %v123 = vsel %vm122, %v121, 0.0
    %124 = vadd.xlane.f32.xlu0 %v123
    %v125 = vpop.xlane.xlu0 %124
    %v126 = vld [vmem:[#allocation2] sm:$0x1]
    %v128 = vlaneseq
    %v129 = vshrl.u32 %v128, 7
    %v130 = vsub.s32 0, %v129
    %v131 = vrot.slane %v126, %v130
    %v133 = vadd.f32 %v125, %v131
    %135 = vset.pattern.permute.xlu0 0
    %136 = vperm.xlu0 %135, %v133
    %v137 = vpop.permute.xlu0 %136
    %139 = vst [vmem:[#allocation3] sm:$0x3] %v137
    // Predicated region
    $region22: #{tpu_custom_call.1} parent=1 // pred_check
      _
    $region23: #{tpu_custom_call.1} parent=1 // pred_check_branch
      %141 = sbr.rel (0) target = $region25
    $region24: #{tpu_custom_call.1} parent=1 // pred_region
      %s143 = ssub.s32 32, 32
      %144 = vsyncadd [#allocation4], %s143
      %s146 = sshll.u32 [#allocation3], 4
      %s147 = int_to_ptr.vmem [resolvable:$true] %s146
      %149 = dma.vmem_to_hbm [thread:$0]  %s147, 32, %s5, [#allocation4]
    $region25: #{tpu_custom_call.1} parent=1 // pred_fallthru
      _
    // Predicated region
    $region26: #{tpu_custom_call.1} parent=1 // pred_check
      _
    $region27: #{tpu_custom_call.1} parent=1 // pred_check_branch
      %151 = sbr.rel (0) target = $region29
    $region28: #{tpu_custom_call.1} parent=1 // pred_region
      %152 = dma.done [#allocation4], 32
    $region29: #{tpu_custom_call.1} parent=1 // pred_fallthru
      _
    %153 = vsyncpa [#allocation4], 1

</llo_original>
